<compile_context>
chip_gen: v6e
topology: v6e:2x2x1
jax: 0.10.0
libtpu: 0.0.40
codegen_flags: <defaults>
</compile_context>

<pallas_src>
import functools

import jax
import jax.numpy as jnp
from jax.experimental import pallas as pl
from jax.experimental.pallas import tpu as pltpu


_LANE = 128  # pixels per de-interleave group (TPU lane width)


def _pick_tile_h(h_pad: int) -> int:
    """Largest sublane-friendly H tile; prefer >= 2 grid steps along H."""
    for t in (256, 128, 64, 32):
        if h_pad % t == 0 and h_pad // t >= 2:
            return t
    for t in (256, 128, 64, 32):
        if h_pad % t == 0:
            return t
    return h_pad  # unreachable: h_pad is always padded to a multiple of 32


def _preprocess_kernel(x_ref, sel_ref, o_ref, *, channels, groups):
    """One (batch, H-tile) step of NHWC-uint8 -> NCHW-float32/255.

    x_ref:   (1, TILE_H, W_pad*C)   uint8    interleaved RGB rows (lane-dense)
    sel_ref: (128*C, 128*C)         bfloat16 per-group 0/1 de-interleave selector
    o_ref:   (1, C, TILE_H, W_pad)  float32  NCHW output tile
    """
    gw = _LANE * channels
    sel = sel_ref[...]
    # Direct u8 -> bf16 cast (exact for 0..255); the whole tile in one pass.
    x = x_ref[0].astype(jnp.bfloat16)                       # (TILE_H, W_pad*C)
    inv255 = jnp.float32(1.0 / 255.0)
    for g in range(groups):                                  # static, small loop
        xg = x[:, g * gw:(g + 1) * gw]                       # lane-aligned slice
        # MXU permutation: column (c*128 + w) of `sel` has a single 1.0 at row
        # (w*C + c).  Exact; accumulate in f32.
        yg = jnp.dot(xg, sel, preferred_element_type=jnp.float32)  # (TILE_H, 128*C)
        yg = yg * inv255
        for ch in range(channels):                           # 128-lane aligned stores
            o_ref[0, ch, :, g * _LANE:(g + 1) * _LANE] = (
                yg[:, ch * _LANE:(ch + 1) * _LANE]
            )


def preprocess_nhwc_to_nchw(x_nhwc: jax.Array) -> jax.Array:
    """BasicPreprocess.forward: permute(0, 3, 1, 2) then divide by 255.

    Expects uint8 NHWC pixel data (the deployment input); returns float32 NCHW.
    """
    n, h, w, c = x_nhwc.shape

    # Pad W to a multiple of 128 (lane groups) and H to a multiple of 32
    # (uint8 sublane tile); sliced back off after the kernel.
    w_pad = ((w + _LANE - 1) // _LANE) * _LANE
    h_pad = ((h + 31) // 32) * 32
    padded = (w_pad != w) or (h_pad != h)
    if padded:
        x_nhwc = jnp.pad(x_nhwc, ((0, 0), (0, h_pad - h), (0, w_pad - w), (0, 0)))

    tile_h = _pick_tile_h(h_pad)
    groups = w_pad // _LANE
    gw = _LANE * c

    # Free row-major merge of (W, C) -> W*C: interleaved channels stay lane-dense.
    x2 = x_nhwc.reshape(n, h_pad, w_pad * c)

    # Per-group 0/1 de-interleave selector: sel[k, ch*128 + wp] = 1 iff k == wp*C + ch.
    col = jnp.arange(gw)
    src = (col % _LANE) * c + (col // _LANE)
    sel = (jnp.arange(gw)[:, None] == src[None, :]).astype(jnp.bfloat16)

    kernel = functools.partial(_preprocess_kernel, channels=c, groups=groups)

    in_bytes = n * h_pad * w_pad * c * x_nhwc.dtype.itemsize
    sel_bytes = gw * gw * 2
    out_bytes = n * c * h_pad * w_pad * 4
    flops = 2 * n * h_pad * groups * gw * gw

    out = pl.pallas_call(
        kernel,
        out_shape=jax.ShapeDtypeStruct((n, c, h_pad, w_pad), jnp.float32),
        grid_spec=pl.GridSpec(
            grid=(n, h_pad // tile_h),
            in_specs=[
                pl.BlockSpec((1, tile_h, w_pad * c), lambda b, hi: (b, hi, 0)),
                # Constant index_map -> fetched once, resident across steps (288 KB).
                pl.BlockSpec((gw, gw), lambda b, hi: (0, 0)),
            ],
            out_specs=pl.BlockSpec((1, c, tile_h, w_pad), lambda b, hi: (b, 0, hi, 0)),
        ),
        compiler_params=pltpu.CompilerParams(
            dimension_semantics=("parallel", "parallel"),
        ),
        cost_estimate=pl.CostEstimate(
            flops=flops,
            transcendentals=0,
            bytes_accessed=in_bytes + sel_bytes + out_bytes,
        ),
    )(x2, sel)

    if padded:
        out = out[:, :, :h, :w]
    return out


@jax.jit
def model_with_processing_forward(x_nhwc: jax.Array) -> jax.Array:
    # ModelWithProcessing.forward
    x = preprocess_nhwc_to_nchw(x_nhwc)
    # TODO(synk): x = self.model(x) — external .pt checkpoint model, not translatable.
    #             When it exists, fold 1/255 into its first conv and drop this pass.
    return x


if __name__ == "__main__":
    key = jax.random.PRNGKey(0)
    # Small image-like NHWC uint8 input. W=128 keeps output stores lane-dense,
    # H=128 -> tile_h=64 -> grid=(2, 2): >= 2 steps per image on both axes.
    N, H, W, C = 2, 128, 128, 3
    img_u8 = jax.random.randint(key, (N, H, W, C), 0, 256, dtype=jnp.int32).astype(
        jnp.uint8
    )

    out = model_with_processing_forward(img_u8)
    out = jax.block_until_ready(out)

    # Reference check (plain JAX) for the implemented stage.
    ref = jnp.transpose(img_u8.astype(jnp.float32), (0, 3, 1, 2)) / 255.0
    assert out.shape == (N, C, H, W), out.shape
    assert out.dtype == jnp.float32, out.dtype
    assert jnp.allclose(out, ref, atol=1e-6, rtol=1e-6)

    print("KERNEL_OK")
</pallas_src>

<mosaic_0001>
module attributes {stable_mosaic.version = 11 : i64} {
  func.func @_preprocess_kernel(%arg0: i32, %arg1: i32, %arg2: memref<1x64x384xi8, #tpu.memory_space<vmem>>, %arg3: memref<384x384xbf16, #tpu.memory_space<vmem>>, %arg4: memref<1x3x64x128xf32, #tpu.memory_space<vmem>>) attributes {dimension_semantics = [#tpu.dimension_semantics<parallel>, #tpu.dimension_semantics<parallel>], iteration_bounds = array<i64: 2, 2>, scalar_prefetch = 0 : i64, scratch_operands = 0 : i64, tpu.core_type = #tpu.core_type<tc>, window_params = [{transform_indices = @transform_0, window_bounds = array<i64: 1, 64, 384>}, {pipeline_mode = #tpu.pipeline_mode<synchronous>, transform_indices = @transform_1, window_bounds = array<i64: 384, 384>}, {transform_indices = @transform_2, window_bounds = array<i64: 1, 3, 64, 128>}]} {
    %c0 = arith.constant 0 : index
    %c0_0 = arith.constant 0 : index
    %0 = vector.load %arg3[%c0, %c0_0] : memref<384x384xbf16, #tpu.memory_space<vmem>>, vector<384x384xbf16>
    %c0_1 = arith.constant 0 : index
    %c0_2 = arith.constant 0 : index
    %c0_3 = arith.constant 0 : index
    %1 = vector.load %arg2[%c0_1, %c0_2, %c0_3] : memref<1x64x384xi8, #tpu.memory_space<vmem>>, vector<1x64x384xi8>
    %2 = vector.shape_cast %1 : vector<1x64x384xi8> to vector<64x384xi8>
    %3 = arith.uitofp %2 : vector<64x384xi8> to vector<64x384xbf16>
    %cst = arith.constant dense<0.000000e+00> : vector<64x384xf32>
    %4 = tpu.matmul %3, %0, %cst {dimension_numbers = #tpu.dot_dimension_numbers<[1], [0], [0], [1], [0, 0, 1, 1], [], []>} : vector<64x384xbf16>, vector<384x384xbf16>, vector<64x384xf32> -> vector<64x384xf32>
    %cst_4 = arith.constant 0.00392156886 : f32
    %5 = vector.broadcast %cst_4 : f32 to vector<64x384xf32>
    %6 = arith.mulf %4, %5 : vector<64x384xf32>
    %7 = vector.extract_strided_slice %6 {offsets = [0, 0], sizes = [64, 128], strides = [1, 1]} : vector<64x384xf32> to vector<64x128xf32>
    %c0_5 = arith.constant 0 : index
    %c0_6 = arith.constant 0 : index
    %c0_7 = arith.constant 0 : index
    %c0_8 = arith.constant 0 : index
    %8 = vector.load %arg4[%c0_5, %c0_6, %c0_7, %c0_8] : memref<1x3x64x128xf32, #tpu.memory_space<vmem>>, vector<1x1x64x128xf32>
    %9 = vector.shape_cast %8 : vector<1x1x64x128xf32> to vector<64x128xf32>
    %10 = vector.shape_cast %7 : vector<64x128xf32> to vector<1x1x64x128xf32>
    tpu.vector_store %arg4[%c0_5, %c0_6, %c0_7, %c0_8], %10 {strides = array<i32>} : memref<1x3x64x128xf32, #tpu.memory_space<vmem>>, vector<1x1x64x128xf32>,
    %11 = vector.extract_strided_slice %6 {offsets = [0, 128], sizes = [64, 128], strides = [1, 1]} : vector<64x384xf32> to vector<64x128xf32>
    %c0_9 = arith.constant 0 : index
    %c1 = arith.constant 1 : index
    %c0_10 = arith.constant 0 : index
    %c0_11 = arith.constant 0 : index
    %12 = vector.load %arg4[%c0_9, %c1, %c0_10, %c0_11] : memref<1x3x64x128xf32, #tpu.memory_space<vmem>>, vector<1x1x64x128xf32>
    %13 = vector.shape_cast %12 : vector<1x1x64x128xf32> to vector<64x128xf32>
    %14 = vector.shape_cast %11 : vector<64x128xf32> to vector<1x1x64x128xf32>
    tpu.vector_store %arg4[%c0_9, %c1, %c0_10, %c0_11], %14 {strides = array<i32>} : memref<1x3x64x128xf32, #tpu.memory_space<vmem>>, vector<1x1x64x128xf32>,
    %15 = vector.extract_strided_slice %6 {offsets = [0, 256], sizes = [64, 128], strides = [1, 1]} : vector<64x384xf32> to vector<64x128xf32>
    %c0_12 = arith.constant 0 : index
    %c2 = arith.constant 2 : index
    %c0_13 = arith.constant 0 : index
    %c0_14 = arith.constant 0 : index
    %16 = vector.load %arg4[%c0_12, %c2, %c0_13, %c0_14] : memref<1x3x64x128xf32, #tpu.memory_space<vmem>>, vector<1x1x64x128xf32>
    %17 = vector.shape_cast %16 : vector<1x1x64x128xf32> to vector<64x128xf32>
    %18 = vector.shape_cast %15 : vector<64x128xf32> to vector<1x1x64x128xf32>
    tpu.vector_store %arg4[%c0_12, %c2, %c0_13, %c0_14], %18 {strides = array<i32>} : memref<1x3x64x128xf32, #tpu.memory_space<vmem>>, vector<1x1x64x128xf32>,
    return
  }
  func.func @transform_0(%arg0: i32, %arg1: i32) -> (i32, i32, i32) {
    %c0_i32 = arith.constant 0 : i32
    %c0_i32_0 = arith.constant 0 : i32
    return %arg0, %arg1, %c0_i32 : i32, i32, i32
  }
  func.func @transform_1(%arg0: i32, %arg1: i32) -> (i32, i32) {
    %c0_i32 = arith.constant 0 : i32
    %c0_i32_0 = arith.constant 0 : i32
    %c0_i32_1 = arith.constant 0 : i32
    return %c0_i32, %c0_i32_0 : i32, i32
  }
  func.func @transform_2(%arg0: i32, %arg1: i32) -> (i32, i32, i32, i32) {
    %c0_i32 = arith.constant 0 : i32
    %c0_i32_0 = arith.constant 0 : i32
    %c0_i32_1 = arith.constant 0 : i32
    return %arg0, %c0_i32, %arg1, %c0_i32_0 : i32, i32, i32, i32
  }
}

</mosaic_0001>

<llo_original>
// kernel: model_with_processing_forward.1
$region0: #{model_with_processing_forward.1}
  #allocation0 [shape = 'u32[]', space=smem, size = 0x4, offset = 0x4, fixed_abs, tag = 'smem constant byte address 0x4 - core index']
  #allocation1 [shape = 'u32[144,128]{1,0:T(1,128)}', space=vmem, size = 0x12000, scoped, tag = 'internal scratch']
  #allocation4 [shape = 's32[]', space=sflag, size = 0x4, offset = 0, fixed_abs, tag = 'sflag constant byte address 0x0 - dummy sync flag']
  %s0 = inlined_call_operand.vmem [shape: u8[2,128,384], index: 0, kind: input, shape index: {}]
  %s1 = inlined_call_operand.vmem [shape: bf16[384,384], index: 1, kind: input, shape index: {}]
  %s2 = inlined_call_operand.hbm [shape: f32[2,3,128,128], index: 2, kind: output, shape index: {}]
  %s3 = sld [smem:[#allocation0]]
  $region41: #{model_with_processing_forward.1} parent=0
    _
  %s5 = ssub.s32 1, %s3
  %s6 = scalar_select 0, %s5, %s3
  $region1: #{model_with_processing_forward.1} parent=0
    #allocation2 [shape = 'u8[196608]{0}', space=vmem, size = 0x30000, scoped, tag = 'output window, operand 0']
    #allocation3 [shape = 's32[2]{0}', space=sflag, size = 0x8, scoped, tag = 'scoped memory for model_with_processing_forward.1']
    %7 = vsyncpa [#allocation3], 0
    %s8 = scalar_lea.sflag [#allocation3], 1
    %9 = vsyncpa %s8, 0
    loop: start=0, step=1, limit=6
    $region2: #{model_with_processing_forward.1} parent=1 // loop_pre_header
      _
    $region3: #{model_with_processing_forward.1} parent=1 // loop_header
      %s11 = sphi 0, %s15
      %p12 = scmp.ge.s32.totalorder %s11, 6
      %s18 = sphi 0, %s30
      %s19 = sphi 0, %s26
      %s20 = sphi 0, %s18
      %s21 = sphi 0, %s19
      %s22 = sphi 0, %s20
      %s23 = sphi 0, %s21
      %s35 = sphi 0, %s37
      %s38 = sphi 0, %s35
      %s39 = sphi 0, %s38
      %s55 = sphi 0, %s39
      %s59 = sphi 0, %s59
      %s61 = sphi 0, %s59
      %s62 = sphi 0, %s61
      %s76 = sphi 0, %s62
      %s84 = sphi 0, %s86
      %s87 = sphi 0, %s84
      %s88 = sphi 0, %s87
      %s104 = sphi 0, %s88
    $region4: #{model_with_processing_forward.1} parent=1 // loop_header_branch
      %14 = sbr.rel (%p12) target = $region8
    $region5: #{model_with_processing_forward.1} parent=1 // loop_body
      %s16 = ssub.s32 %s11, 1
      %s17 = ssub.s32 %s11, 2
      %s24 = sadd.s32 1, %s19
      %p25 = scmp.ge.s32.totalorder %s24, 2
      %s26 = scalar_select %p25, 0, %s24
      %s27 = sadd.s32 1, %s18
      %s28 = scalar_select %p25, %s27, %s18
      %p29 = scmp.ge.s32.totalorder %s28, 2
      %s30 = scalar_select %p29, 0, %s28
      %s31 = ssub.s32 %s18, %s30
      %s32 = ssub.s32 %s19, %s26
      %s33 = sor.u32 %s31, %s32
      %p34 = scmp.eq.s32.totalorder %s33, 0
      %s36 = sadd.s32 %s35, 1
      %s37 = scalar_select %p34, %s35, %s36
      %p40 = pneg %p34
      %p41 = scmp.eq.s32.totalorder %s11, 3
      %p42 = por %p40, %p41
      %p43 = scmp.ne.s32.totalorder %s35, %s38
      %p44 = scmp.eq.s32.totalorder %s11, 0
      %p45 = por %p43, %p44
      %p46 = scmp.ne.s32.totalorder %s35, %s38
      %p47 = scmp.eq.s32.totalorder %s16, 3
      %p48 = por %p46, %p47
      %p49 = scmp.ne.s32.totalorder %s38, %s39
      %p50 = scmp.eq.s32.totalorder %s16, 0
      %p51 = por %p49, %p50
      %p52 = scmp.ne.s32.totalorder %s38, %s39
      %p53 = scmp.eq.s32.totalorder %s17, 3
      %p54 = por %p52, %p53
      %p56 = scmp.ne.s32.totalorder %s39, %s55
      %p57 = scmp.eq.s32.totalorder %s17, 0
      %p58 = por %p56, %p57
      %s60 = sadd.s32 %s59, 1
      %p63 = scmp.eq.s32.totalorder %s11, 3
      %p64 = scmp.ne.s32.totalorder %s59, %s61
      %p65 = scmp.eq.s32.totalorder %s11, 0
      %p66 = por %p64, %p65
      %p67 = scmp.ne.s32.totalorder %s59, %s61
      %p68 = scmp.eq.s32.totalorder %s16, 3
      %p69 = por %p67, %p68
      %p70 = scmp.ne.s32.totalorder %s61, %s62
      %p71 = scmp.eq.s32.totalorder %s16, 0
      %p72 = por %p70, %p71
      %p73 = scmp.ne.s32.totalorder %s61, %s62
      %p74 = scmp.eq.s32.totalorder %s17, 3
      %p75 = por %p73, %p74
      %p77 = scmp.ne.s32.totalorder %s62, %s76
      %p78 = scmp.eq.s32.totalorder %s17, 0
      %p79 = por %p77, %p78
      %s80 = ssub.s32 %s18, %s30
      %s81 = ssub.s32 %s19, %s26
      %s82 = sor.u32 %s80, %s81
      %p83 = scmp.eq.s32.totalorder %s82, 0
      %s85 = sadd.s32 %s84, 1
      %s86 = scalar_select %p83, %s84, %s85
      %p89 = pneg %p83
      %p90 = scmp.eq.s32.totalorder %s11, 3
      %p91 = por %p89, %p90
      %p92 = scmp.ne.s32.totalorder %s84, %s87
      %p93 = scmp.eq.s32.totalorder %s11, 0
      %p94 = por %p92, %p93
      %p95 = scmp.ne.s32.totalorder %s84, %s87
      %p96 = scmp.eq.s32.totalorder %s16, 3
      %p97 = por %p95, %p96
      %p98 = scmp.ne.s32.totalorder %s87, %s88
      %p99 = scmp.eq.s32.totalorder %s16, 0
      %p100 = por %p98, %p99
      %p101 = scmp.ne.s32.totalorder %s87, %s88
      %p102 = scmp.eq.s32.totalorder %s17, 3
      %p103 = por %p101, %p102
      %p105 = scmp.ne.s32.totalorder %s88, %s104
      %p106 = scmp.eq.s32.totalorder %s17, 0
      %p107 = por %p105, %p106
      %p108 = scmp.le.s32.totalorder 1, %s11
      %p109 = scmp.lt.s32.totalorder %s11, 5
      %p110 = pnand %p108, %p109
      %p111 = pneg %p110
      // Predicated region
      $region9: #{model_with_processing_forward.1} parent=5 // pred_check
        _
      $region10: #{model_with_processing_forward.1} parent=5 // pred_check_branch
        %113 = sbr.rel (%p110) target = $region12
      $region11: #{model_with_processing_forward.1} parent=5 // pred_region
        %s114 = ssub.s32 %s11, 1
        // Predicated region
        $region13: #{model_with_processing_forward.1} parent=11 // pred_check
          %p115 = pneg %p72
        $region14: #{model_with_processing_forward.1} parent=11 // pred_check_branch
          %117 = sbr.rel (%p115) target = $region16
        $region15: #{model_with_processing_forward.1} parent=11 // pred_region
          _
        $region16: #{model_with_processing_forward.1} parent=11 // pred_fallthru
          _
      $region12: #{model_with_processing_forward.1} parent=5 // pred_fallthru
        _
      %p118 = scmp.lt.s32.totalorder %s11, 4
      // Predicated region
      $region17: #{model_with_processing_forward.1} parent=5 // pred_check
        %p119 = pneg %p118
      $region18: #{model_with_processing_forward.1} parent=5 // pred_check_branch
        %121 = sbr.rel (%p119) target = $region20
      $region19: #{model_with_processing_forward.1} parent=5 // pred_region
        // Predicated region
        $region21: #{model_with_processing_forward.1} parent=19 // pred_check
          %p122 = pneg %p45
        $region22: #{model_with_processing_forward.1} parent=19 // pred_check_branch
          %124 = sbr.rel (%p122) target = $region24
        $region23: #{model_with_processing_forward.1} parent=19 // pred_region
          %s125 = smul.u32 2, %s19
          %p126 = scmp.lt.s32.totalorder %s18, 1
          %s127 = scalar_select %p126, %s18, 1
          %p128 = scmp.lt.s32.totalorder %s125, 3
          %s129 = scalar_select %p128, %s125, 3
          %s130 = smul.addr %s129, 3
          %s131 = smul.addr %s127, 12
          %s132 = sadd.s32 %s130, %s131
          %s133 = smul.addr %s132, 8
          %s134 = scalar_lea.vmem %s0, %s133
          %s135 = smul.u32 2, %s19
        $region24: #{model_with_processing_forward.1} parent=19 // pred_fallthru
          _
      $region20: #{model_with_processing_forward.1} parent=5 // pred_fallthru
        _
      %p136 = scmp.le.s32.totalorder 1, %s11
      %p137 = scmp.lt.s32.totalorder %s11, 5
      %p138 = pnand %p136, %p137
      %p139 = pneg %p138
      // Predicated region
      $region25: #{model_with_processing_forward.1} parent=5 // pred_check
        _
      $region26: #{model_with_processing_forward.1} parent=5 // pred_check_branch
        %141 = sbr.rel (%p138) target = $region28
      $region27: #{model_with_processing_forward.1} parent=5 // pred_region
        %s142 = ssub.s32 %s11, 1
        %s143 = smul.u32 2, %s21
        %p144 = scmp.lt.s32.totalorder %s20, 1
        %s145 = scalar_select %p144, %s20, 1
        %p146 = scmp.lt.s32.totalorder %s143, 3
        %s147 = scalar_select %p146, %s143, 3
        %s148 = smul.addr %s147, 3
        %s149 = smul.addr %s145, 12
        %s150 = sadd.s32 %s148, %s149
        %s151 = smul.addr %s150, 8
        %s152 = scalar_lea.vmem %s0, %s151
        %p153 = pneg %p51
        %p154 = pneg %p48
        %p155 = pneg %p72
        %p156 = pneg %p69
        %p157 = pneg %p100
        %p158 = pneg %p97
        %s159 = sand.u32 %s87, 1
        %s160 = scalar_lea.sflag [#allocation3], %s159
        %s161 = sand.u32 %s87, 1
        %s162 = smul.addr %s161, 192
        %s163 = scalar_lea.vmem [#allocation2], %s162
        %s164 = smul.u32 2, %s21
        %p165 = scmp.lt.s32.totalorder %s20, 1
        %s166 = scalar_select %p165, %s20, 1
        %p167 = scmp.lt.s32.totalorder %s164, 3
        %s168 = scalar_select %p167, %s164, 3
        %s169 = smul.addr %s168, 3
        %s170 = smul.addr %s166, 12
        %s171 = sadd.s32 %s169, %s170
        %s172 = smul.addr %s171, 8
        %s173 = scalar_lea.vmem %s0, %s172
        %s174 = smul.u32 2, %s21
        %s175 = smul.u32 8, %s21
        %v177 = vld [vmem:[%s1] sm:$0xff]
        %v178 = vld [vmem:[%s1 + $0x8] sm:$0xf]
        %v179 = vld [vmem:[%s1 + $0xc] sm:$0xff]
        %v180 = vld [vmem:[%s1 + $0x14] sm:$0xf]
        %v181 = vld [vmem:[%s1 + $0x18] sm:$0xff]
        %v182 = vld [vmem:[%s1 + $0x20] sm:$0xf]
        %v183 = vld [vmem:[%s1 + $0x24] sm:$0xff]
        %v184 = vld [vmem:[%s1 + $0x2c] sm:$0xf]
        %v185 = vld [vmem:[%s1 + $0x30] sm:$0xff]
        %v186 = vld [vmem:[%s1 + $0x38] sm:$0xf]
        %v187 = vld [vmem:[%s1 + $0x3c] sm:$0xff]
        %v188 = vld [vmem:[%s1 + $0x44] sm:$0xf]
        %v189 = vld [vmem:[%s1 + $0x48] sm:$0xff]
        %v190 = vld [vmem:[%s1 + $0x50] sm:$0xf]
        %v191 = vld [vmem:[%s1 + $0x54] sm:$0xff]
        %v192 = vld [vmem:[%s1 + $0x5c] sm:$0xf]
        %v193 = vld [vmem:[%s1 + $0x60] sm:$0xff]
        %v194 = vld [vmem:[%s1 + $0x68] sm:$0xf]
        %v195 = vld [vmem:[%s1 + $0x6c] sm:$0xff]
        %v196 = vld [vmem:[%s1 + $0x74] sm:$0xf]
        %v197 = vld [vmem:[%s1 + $0x78] sm:$0xff]
        %v198 = vld [vmem:[%s1 + $0x80] sm:$0xf]
        %v199 = vld [vmem:[%s1 + $0x84] sm:$0xff]
        %v200 = vld [vmem:[%s1 + $0x8c] sm:$0xf]
        %v201 = vld [vmem:[%s1 + $0x90] sm:$0xff]
        %v202 = vld [vmem:[%s1 + $0x98] sm:$0xf]
        %v203 = vld [vmem:[%s1 + $0x9c] sm:$0xff]
        %v204 = vld [vmem:[%s1 + $0xa4] sm:$0xf]
        %v205 = vld [vmem:[%s1 + $0xa8] sm:$0xff]
        %v206 = vld [vmem:[%s1 + $0xb0] sm:$0xf]
        %v207 = vld [vmem:[%s1 + $0xb4] sm:$0xff]
        %v208 = vld [vmem:[%s1 + $0xbc] sm:$0xf]
        %v209 = vld [vmem:[%s1 + $0xc0] sm:$0xff]
        %v210 = vld [vmem:[%s1 + $0xc8] sm:$0xf]
        %v211 = vld [vmem:[%s1 + $0xcc] sm:$0xff]
        %v212 = vld [vmem:[%s1 + $0xd4] sm:$0xf]
        %v213 = vld [vmem:[%s1 + $0xd8] sm:$0xff]
        %v214 = vld [vmem:[%s1 + $0xe0] sm:$0xf]
        %v215 = vld [vmem:[%s1 + $0xe4] sm:$0xff]
        %v216 = vld [vmem:[%s1 + $0xec] sm:$0xf]
        %v217 = vld [vmem:[%s1 + $0xf0] sm:$0xff]
        %v218 = vld [vmem:[%s1 + $0xf8] sm:$0xf]
        %v219 = vld [vmem:[%s1 + $0xfc] sm:$0xff]
        %v220 = vld [vmem:[%s1 + $0x104] sm:$0xf]
        %v221 = vld [vmem:[%s1 + $0x108] sm:$0xff]
        %v222 = vld [vmem:[%s1 + $0x110] sm:$0xf]
        %v223 = vld [vmem:[%s1 + $0x114] sm:$0xff]
        %v224 = vld [vmem:[%s1 + $0x11c] sm:$0xf]
        %v225 = vld [vmem:[%s1 + $0x120] sm:$0xff]
        %v226 = vld [vmem:[%s1 + $0x128] sm:$0xf]
        %v227 = vld [vmem:[%s1 + $0x12c] sm:$0xff]
        %v228 = vld [vmem:[%s1 + $0x134] sm:$0xf]
        %v229 = vld [vmem:[%s1 + $0x138] sm:$0xff]
        %v230 = vld [vmem:[%s1 + $0x140] sm:$0xf]
        %v231 = vld [vmem:[%s1 + $0x144] sm:$0xff]
        %v232 = vld [vmem:[%s1 + $0x14c] sm:$0xf]
        %v233 = vld [vmem:[%s1 + $0x150] sm:$0xff]
        %v234 = vld [vmem:[%s1 + $0x158] sm:$0xf]
        %v235 = vld [vmem:[%s1 + $0x15c] sm:$0xff]
        %v236 = vld [vmem:[%s1 + $0x164] sm:$0xf]
        %v237 = vld [vmem:[%s1 + $0x168] sm:$0xff]
        %v238 = vld [vmem:[%s1 + $0x170] sm:$0xf]
        %v239 = vld [vmem:[%s1 + $0x174] sm:$0xff]
        %v240 = vld [vmem:[%s1 + $0x17c] sm:$0xf]
        %v241 = vld [vmem:[%s1 + $0x180] sm:$0xff]
        %v242 = vld [vmem:[%s1 + $0x188] sm:$0xf]
        %v243 = vld [vmem:[%s1 + $0x18c] sm:$0xff]
        %v244 = vld [vmem:[%s1 + $0x194] sm:$0xf]
        %v245 = vld [vmem:[%s1 + $0x198] sm:$0xff]
        %v246 = vld [vmem:[%s1 + $0x1a0] sm:$0xf]
        %v247 = vld [vmem:[%s1 + $0x1a4] sm:$0xff]
        %v248 = vld [vmem:[%s1 + $0x1ac] sm:$0xf]
        %v249 = vld [vmem:[%s1 + $0x1b0] sm:$0xff]
        %v250 = vld [vmem:[%s1 + $0x1b8] sm:$0xf]
        %v251 = vld [vmem:[%s1 + $0x1bc] sm:$0xff]
        %v252 = vld [vmem:[%s1 + $0x1c4] sm:$0xf]
        %v253 = vld [vmem:[%s1 + $0x1c8] sm:$0xff]
        %v254 = vld [vmem:[%s1 + $0x1d0] sm:$0xf]
        %v255 = vld [vmem:[%s1 + $0x1d4] sm:$0xff]
        %v256 = vld [vmem:[%s1 + $0x1dc] sm:$0xf]
        %v257 = vld [vmem:[%s1 + $0x1e0] sm:$0xff]
        %v258 = vld [vmem:[%s1 + $0x1e8] sm:$0xf]
        %v259 = vld [vmem:[%s1 + $0x1ec] sm:$0xff]
        %v260 = vld [vmem:[%s1 + $0x1f4] sm:$0xf]
        %v261 = vld [vmem:[%s1 + $0x1f8] sm:$0xff]
        %v262 = vld [vmem:[%s1 + $0x200] sm:$0xf]
        %v263 = vld [vmem:[%s1 + $0x204] sm:$0xff]
        %v264 = vld [vmem:[%s1 + $0x20c] sm:$0xf]
        %v265 = vld [vmem:[%s1 + $0x210] sm:$0xff]
        %v266 = vld [vmem:[%s1 + $0x218] sm:$0xf]
        %v267 = vld [vmem:[%s1 + $0x21c] sm:$0xff]
        %v268 = vld [vmem:[%s1 + $0x224] sm:$0xf]
        %v269 = vld [vmem:[%s1 + $0x228] sm:$0xff]
        %v270 = vld [vmem:[%s1 + $0x230] sm:$0xf]
        %v271 = vld [vmem:[%s1 + $0x234] sm:$0xff]
        %v272 = vld [vmem:[%s1 + $0x23c] sm:$0xf]
        %v273 = vld [vmem:[%s173] sm:$0xff]
        %v274 = vld [vmem:[%s173 + $0x8] sm:$0xff]
        %v275 = vld [vmem:[%s173 + $0x10] sm:$0xff]
        %v276 = vld [vmem:[%s173 + $0x18] sm:$0xff]
        %v277 = vld [vmem:[%s173 + $0x20] sm:$0xff]
        %v278 = vld [vmem:[%s173 + $0x28] sm:$0xff]
        %v279 = vunpack.c.l.u8.bf16 %v273
        %v280 = vunpack.c.l.u8.bf16 %v274
        %v281 = vunpack.c.l.u8.bf16 %v275
        %v282 = vunpack.c.h.u8.bf16 %v273
        %v283 = vunpack.c.h.u8.bf16 %v274
        %v284 = vunpack.c.h.u8.bf16 %v275
        %v285 = vunpack.c.l.u8.bf16 %v276
        %v286 = vunpack.c.l.u8.bf16 %v277
        %v287 = vunpack.c.l.u8.bf16 %v278
        %v288 = vunpack.c.h.u8.bf16 %v276
        %v289 = vunpack.c.h.u8.bf16 %v277
        %v290 = vunpack.c.h.u8.bf16 %v278
        %v387 = vunpack.c.l.b16 %v177
        %v388 = vunpack.c.h.b16 %v177
        %v389 = vunpack.c.l.b16 %v178
        %v390 = vunpack.c.l.b16 %v179
        %v391 = vunpack.c.h.b16 %v179
        %v392 = vunpack.c.l.b16 %v180
        %v393 = vunpack.c.l.b16 %v181
        %v394 = vunpack.c.h.b16 %v181
        %v395 = vunpack.c.l.b16 %v182
        %v396 = vunpack.c.l.b16 %v183
        %v397 = vunpack.c.h.b16 %v183
        %v398 = vunpack.c.l.b16 %v184
        %v399 = vunpack.c.l.b16 %v185
        %v400 = vunpack.c.h.b16 %v185
        %v401 = vunpack.c.l.b16 %v186
        %v402 = vunpack.c.l.b16 %v187
        %v403 = vunpack.c.h.b16 %v187
        %v404 = vunpack.c.l.b16 %v188
        %v405 = vunpack.c.l.b16 %v189
        %v406 = vunpack.c.h.b16 %v189
        %v407 = vunpack.c.l.b16 %v190
        %v408 = vunpack.c.l.b16 %v191
        %v409 = vunpack.c.h.b16 %v191
        %v410 = vunpack.c.l.b16 %v192
        %v411 = vunpack.c.l.b16 %v193
        %v412 = vunpack.c.h.b16 %v193
        %v413 = vunpack.c.l.b16 %v194
        %v414 = vunpack.c.l.b16 %v195
        %v415 = vunpack.c.h.b16 %v195
        %v416 = vunpack.c.l.b16 %v196
        %v417 = vunpack.c.l.b16 %v197
        %v418 = vunpack.c.h.b16 %v197
        %v419 = vunpack.c.l.b16 %v198
        %v420 = vunpack.c.l.b16 %v199
        %v421 = vunpack.c.h.b16 %v199
        %v422 = vunpack.c.l.b16 %v200
        %v423 = vunpack.c.l.b16 %v201
        %v424 = vunpack.c.h.b16 %v201
        %v425 = vunpack.c.l.b16 %v202
        %v426 = vunpack.c.l.b16 %v203
        %v427 = vunpack.c.h.b16 %v203
        %v428 = vunpack.c.l.b16 %v204
        %v429 = vunpack.c.l.b16 %v205
        %v430 = vunpack.c.h.b16 %v205
        %v431 = vunpack.c.l.b16 %v206
        %v432 = vunpack.c.l.b16 %v207
        %v433 = vunpack.c.h.b16 %v207
        %v434 = vunpack.c.l.b16 %v208
        %v435 = vunpack.c.l.b16 %v209
        %v436 = vunpack.c.h.b16 %v209
        %v437 = vunpack.c.l.b16 %v210
        %v438 = vunpack.c.l.b16 %v211
        %v439 = vunpack.c.h.b16 %v211
        %v440 = vunpack.c.l.b16 %v212
        %v441 = vunpack.c.l.b16 %v213
        %v442 = vunpack.c.h.b16 %v213
        %v443 = vunpack.c.l.b16 %v214
        %v444 = vunpack.c.l.b16 %v215
        %v445 = vunpack.c.h.b16 %v215
        %v446 = vunpack.c.l.b16 %v216
        %v447 = vunpack.c.l.b16 %v217
        %v448 = vunpack.c.h.b16 %v217
        %v449 = vunpack.c.l.b16 %v218
        %v450 = vunpack.c.l.b16 %v219
        %v451 = vunpack.c.h.b16 %v219
        %v452 = vunpack.c.l.b16 %v220
        %v453 = vunpack.c.l.b16 %v221
        %v454 = vunpack.c.h.b16 %v221
        %v455 = vunpack.c.l.b16 %v222
        %v456 = vunpack.c.l.b16 %v223
        %v457 = vunpack.c.h.b16 %v223
        %v458 = vunpack.c.l.b16 %v224
        %v459 = vunpack.c.l.b16 %v225
        %v460 = vunpack.c.h.b16 %v225
        %v461 = vunpack.c.l.b16 %v226
        %v462 = vunpack.c.l.b16 %v227
        %v463 = vunpack.c.h.b16 %v227
        %v464 = vunpack.c.l.b16 %v228
        %v465 = vunpack.c.l.b16 %v229
        %v466 = vunpack.c.h.b16 %v229
        %v467 = vunpack.c.l.b16 %v230
        %v468 = vunpack.c.l.b16 %v231
        %v469 = vunpack.c.h.b16 %v231
        %v470 = vunpack.c.l.b16 %v232
        %v471 = vunpack.c.l.b16 %v233
        %v472 = vunpack.c.h.b16 %v233
        %v473 = vunpack.c.l.b16 %v234
        %v474 = vunpack.c.l.b16 %v235
        %v475 = vunpack.c.h.b16 %v235
        %v476 = vunpack.c.l.b16 %v236
        %v477 = vunpack.c.l.b16 %v237
        %v478 = vunpack.c.h.b16 %v237
        %v479 = vunpack.c.l.b16 %v238
        %v480 = vunpack.c.l.b16 %v239
        %v481 = vunpack.c.h.b16 %v239
        %v482 = vunpack.c.l.b16 %v240
        %v483 = vunpack.c.l.b16 %v241
        %v484 = vunpack.c.h.b16 %v241
        %v485 = vunpack.c.l.b16 %v242
        %v486 = vunpack.c.l.b16 %v243
        %v487 = vunpack.c.h.b16 %v243
        %v488 = vunpack.c.l.b16 %v244
        %v489 = vunpack.c.l.b16 %v245
        %v490 = vunpack.c.h.b16 %v245
        %v491 = vunpack.c.l.b16 %v246
        %v492 = vunpack.c.l.b16 %v247
        %v493 = vunpack.c.h.b16 %v247
        %v494 = vunpack.c.l.b16 %v248
        %v495 = vunpack.c.l.b16 %v249
        %v496 = vunpack.c.h.b16 %v249
        %v497 = vunpack.c.l.b16 %v250
        %v498 = vunpack.c.l.b16 %v251
        %v499 = vunpack.c.h.b16 %v251
        %v500 = vunpack.c.l.b16 %v252
        %v501 = vunpack.c.l.b16 %v253
        %v502 = vunpack.c.h.b16 %v253
        %v503 = vunpack.c.l.b16 %v254
        %v504 = vunpack.c.l.b16 %v255
        %v505 = vunpack.c.h.b16 %v255
        %v506 = vunpack.c.l.b16 %v256
        %v507 = vunpack.c.l.b16 %v257
        %v508 = vunpack.c.h.b16 %v257
        %v509 = vunpack.c.l.b16 %v258
        %v510 = vunpack.c.l.b16 %v259
        %v511 = vunpack.c.h.b16 %v259
        %v512 = vunpack.c.l.b16 %v260
        %v513 = vunpack.c.l.b16 %v261
        %v514 = vunpack.c.h.b16 %v261
        %v515 = vunpack.c.l.b16 %v262
        %v516 = vunpack.c.l.b16 %v263
        %v517 = vunpack.c.h.b16 %v263
        %v518 = vunpack.c.l.b16 %v264
        %v519 = vunpack.c.l.b16 %v265
        %v520 = vunpack.c.h.b16 %v265
        %v521 = vunpack.c.l.b16 %v266
        %v522 = vunpack.c.l.b16 %v267
        %v523 = vunpack.c.h.b16 %v267
        %v524 = vunpack.c.l.b16 %v268
        %v525 = vunpack.c.l.b16 %v269
        %v526 = vunpack.c.h.b16 %v269
        %v527 = vunpack.c.l.b16 %v270
        %v528 = vunpack.c.l.b16 %v271
        %v529 = vunpack.c.h.b16 %v271
        %v530 = vunpack.c.l.b16 %v272
        %v531 = vpack.c.b16 %v390, %v387
        %v532 = vpack.c.b16 %v391, %v388
        %v533 = vpack.c.b16 %v392, %v389
        %v534 = vpack.c.b16 %v396, %v393
        %v535 = vpack.c.b16 %v397, %v394
        %v536 = vpack.c.b16 %v398, %v395
        %v537 = vpack.c.b16 %v402, %v399
        %v538 = vpack.c.b16 %v403, %v400
        %v539 = vpack.c.b16 %v404, %v401
        %v540 = vpack.c.b16 %v408, %v405
        %v541 = vpack.c.b16 %v409, %v406
        %v542 = vpack.c.b16 %v410, %v407
        %v543 = vpack.c.b16 %v414, %v411
        %v544 = vpack.c.b16 %v415, %v412
        %v545 = vpack.c.b16 %v416, %v413
        %v546 = vpack.c.b16 %v420, %v417
        %v547 = vpack.c.b16 %v421, %v418
        %v548 = vpack.c.b16 %v422, %v419
        %v549 = vpack.c.b16 %v426, %v423
        %v550 = vpack.c.b16 %v427, %v424
        %v551 = vpack.c.b16 %v428, %v425
        %v552 = vpack.c.b16 %v432, %v429
        %v553 = vpack.c.b16 %v433, %v430
        %v554 = vpack.c.b16 %v434, %v431
        %v555 = vpack.c.b16 %v438, %v435
        %v556 = vpack.c.b16 %v439, %v436
        %v557 = vpack.c.b16 %v440, %v437
        %v558 = vpack.c.b16 %v444, %v441
        %v559 = vpack.c.b16 %v445, %v442
        %v560 = vpack.c.b16 %v446, %v443
        %v561 = vpack.c.b16 %v450, %v447
        %v562 = vpack.c.b16 %v451, %v448
        %v563 = vpack.c.b16 %v452, %v449
        %v564 = vpack.c.b16 %v456, %v453
        %v565 = vpack.c.b16 %v457, %v454
        %v566 = vpack.c.b16 %v458, %v455
        %v567 = vpack.c.b16 %v462, %v459
        %v568 = vpack.c.b16 %v463, %v460
        %v569 = vpack.c.b16 %v464, %v461
        %v570 = vpack.c.b16 %v468, %v465
        %v571 = vpack.c.b16 %v469, %v466
        %v572 = vpack.c.b16 %v470, %v467
        %v573 = vpack.c.b16 %v474, %v471
        %v574 = vpack.c.b16 %v475, %v472
        %v575 = vpack.c.b16 %v476, %v473
        %v576 = vpack.c.b16 %v480, %v477
        %v577 = vpack.c.b16 %v481, %v478
        %v578 = vpack.c.b16 %v482, %v479
        %v579 = vpack.c.b16 %v486, %v483
        %v580 = vpack.c.b16 %v487, %v484
        %v581 = vpack.c.b16 %v488, %v485
        %v582 = vpack.c.b16 %v492, %v489
        %v583 = vpack.c.b16 %v493, %v490
        %v584 = vpack.c.b16 %v494, %v491
        %v585 = vpack.c.b16 %v498, %v495
        %v586 = vpack.c.b16 %v499, %v496
        %v587 = vpack.c.b16 %v500, %v497
        %v588 = vpack.c.b16 %v504, %v501
        %v589 = vpack.c.b16 %v505, %v502
        %v590 = vpack.c.b16 %v506, %v503
        %v591 = vpack.c.b16 %v510, %v507
        %v592 = vpack.c.b16 %v511, %v508
        %v593 = vpack.c.b16 %v512, %v509
        %v594 = vpack.c.b16 %v516, %v513
        %v595 = vpack.c.b16 %v517, %v514
        %v596 = vpack.c.b16 %v518, %v515
        %v597 = vpack.c.b16 %v522, %v519
        %v598 = vpack.c.b16 %v523, %v520
        %v599 = vpack.c.b16 %v524, %v521
        %v600 = vpack.c.b16 %v528, %v525
        %v601 = vpack.c.b16 %v529, %v526
        %v602 = vpack.c.b16 %v530, %v527
        %675 = vmatprep.subr.bf16.mxu0 %v553
        %676 = vmatpush1.bf16.msra.mxu0 %v552
        %677 = vmatprep.subr.bf16.mxu0 %v550
        %678 = vmatpush1.bf16.msra.mxu0 %v549
        %679 = vmatprep.subr.bf16.mxu0 %v547
        %680 = vmatpush1.bf16.msra.mxu0 %v546
        %681 = vmatprep.subr.bf16.mxu0 %v544
        %682 = vmatpush1.bf16.msra.mxu0 %v543
        %683 = vmatprep.subr.bf16.mxu0 %v541
        %684 = vmatpush1.bf16.msra.mxu0 %v540
        %685 = vmatprep.subr.bf16.mxu0 %v538
        %686 = vmatpush1.bf16.msra.mxu0 %v537
        %687 = vmatprep.subr.bf16.mxu0 %v535
        %688 = vmatpush1.bf16.msra.mxu0 %v534
        %689 = vmatprep.subr.bf16.mxu0 %v532
        %690 = vmatpush1.bf16.msra.mxu0 %v531
        %691 = vmatprep.subr.bf16.mxu0 %v577
        %692 = vmatpush2.bf16.msra.mxu0 %v576
        %693 = vmatprep.subr.bf16.mxu0 %v574
        %694 = vmatpush2.bf16.msra.mxu0 %v573
        %695 = vmatprep.subr.bf16.mxu0 %v571
        %696 = vmatpush2.bf16.msra.mxu0 %v570
        %697 = vmatprep.subr.bf16.mxu0 %v568
        %698 = vmatpush2.bf16.msra.mxu0 %v567
        %699 = vmatprep.subr.bf16.mxu0 %v565
        %700 = vmatpush2.bf16.msra.mxu0 %v564
        %701 = vmatprep.subr.bf16.mxu0 %v562
        %702 = vmatpush2.bf16.msra.mxu0 %v561
        %703 = vmatprep.subr.bf16.mxu0 %v559
        %704 = vmatpush2.bf16.msra.mxu0 %v558
        %705 = vmatprep.subr.bf16.mxu0 %v556
        %706 = vmatpush2.bf16.msra.mxu0 %v555
        %707 = vmatprep.mubr.bf16.mxu0 %v280
        %708 = vmatmul.mubr.bf16.gmra.mxu0 %v279
        %v709 = vpop.f32.mrf.mxu0
        %v710 = vadd.f32 0.0, %v709
        %v711 = vpop.f32.mrf.mxu0
        %v712 = vadd.f32 0.0, %v711
        %v713 = vpop.f32.mrf.mxu0
        %v714 = vadd.f32 0.0, %v713
        %v715 = vpop.f32.mrf.mxu0
        %v716 = vadd.f32 0.0, %v715
        %717 = vmatprep.mubr.bf16.mxu0 %v283
        %718 = vmatmul.mubr.bf16.gmra.mxu0 %v282
        %v719 = vpop.f32.mrf.mxu0
        %v720 = vadd.f32 0.0, %v719
        %v721 = vpop.f32.mrf.mxu0
        %v722 = vadd.f32 0.0, %v721
        %v723 = vpop.f32.mrf.mxu0
        %v724 = vadd.f32 0.0, %v723
        %v725 = vpop.f32.mrf.mxu0
        %v726 = vadd.f32 0.0, %v725
        %727 = vmatprep.mubr.bf16.mxu0 %v286
        %728 = vmatmul.mubr.bf16.gmra.mxu0 %v285
        %v729 = vpop.f32.mrf.mxu0
        %v730 = vadd.f32 0.0, %v729
        %v731 = vpop.f32.mrf.mxu0
        %v732 = vadd.f32 0.0, %v731
        %v733 = vpop.f32.mrf.mxu0
        %v734 = vadd.f32 0.0, %v733
        %v735 = vpop.f32.mrf.mxu0
        %v736 = vadd.f32 0.0, %v735
        %737 = vmatprep.mubr.bf16.mxu0 %v289
        %738 = vmatmul.mubr.bf16.gmra.mxu0 %v288
        %v739 = vpop.f32.mrf.mxu0
        %v740 = vadd.f32 0.0, %v739
        %v741 = vpop.f32.mrf.mxu0
        %v742 = vadd.f32 0.0, %v741
        %v743 = vpop.f32.mrf.mxu0
        %v744 = vadd.f32 0.0, %v743
        %v745 = vpop.f32.mrf.mxu0
        %v746 = vadd.f32 0.0, %v745
        %747 = vdwg.mxu0
        %748 = vmatprep.subr.bf16.mxu0 %v601
        %749 = vmatpush1.bf16.msra.mxu0 %v600
        %750 = vmatprep.subr.bf16.mxu0 %v598
        %751 = vmatpush1.bf16.msra.mxu0 %v597
        %752 = vmatprep.subr.bf16.mxu0 %v595
        %753 = vmatpush1.bf16.msra.mxu0 %v594
        %754 = vmatprep.subr.bf16.mxu0 %v592
        %755 = vmatpush1.bf16.msra.mxu0 %v591
        %756 = vmatprep.subr.bf16.mxu0 %v589
        %757 = vmatpush1.bf16.msra.mxu0 %v588
        %758 = vmatprep.subr.bf16.mxu0 %v586
        %759 = vmatpush1.bf16.msra.mxu0 %v585
        %760 = vmatprep.subr.bf16.mxu0 %v583
        %761 = vmatpush1.bf16.msra.mxu0 %v582
        %762 = vmatprep.subr.bf16.mxu0 %v580
        %763 = vmatpush1.bf16.msra.mxu0 %v579
        %764 = vmatprep.subr.bf16.mxu0 0
        %765 = vmatpush2.bf16.msra.mxu0 0
        %766 = vmatprep.subr.bf16.mxu0 0
        %767 = vmatpush2.bf16.msra.mxu0 0
        %768 = vmatprep.subr.bf16.mxu0 0
        %769 = vmatpush2.bf16.msra.mxu0 0
        %770 = vmatprep.subr.bf16.mxu0 0
        %771 = vmatpush2.bf16.msra.mxu0 0
        %772 = vmatprep.subr.bf16.mxu0 0
        %773 = vmatpush2.bf16.msra.mxu0 0
        %774 = vmatprep.subr.bf16.mxu0 0
        %775 = vmatpush2.bf16.msra.mxu0 0
        %776 = vmatprep.subr.bf16.mxu0 0
        %777 = vmatpush2.bf16.msra.mxu0 0
        %778 = vmatprep.subr.bf16.mxu0 0
        %779 = vmatpush2.bf16.msra.mxu0 0
        %780 = vmatprep.mubr.bf16.mxu0 0
        %781 = vmatmul.mubr.bf16.gmra.mxu0 %v281
        %v782 = vpop.f32.mrf.mxu0
        %v783 = vadd.f32 %v710, %v782
        %v784 = vpop.f32.mrf.mxu0
        %v785 = vadd.f32 %v712, %v784
        %v786 = vpop.f32.mrf.mxu0
        %v787 = vadd.f32 %v714, %v786
        %v788 = vpop.f32.mrf.mxu0
        %v789 = vadd.f32 %v716, %v788
        %790 = vmatprep.mubr.bf16.mxu0 0
        %791 = vmatmul.mubr.bf16.gmra.mxu0 %v284
        %v792 = vpop.f32.mrf.mxu0
        %v793 = vadd.f32 %v720, %v792
        %v794 = vpop.f32.mrf.mxu0
        %v795 = vadd.f32 %v722, %v794
        %v796 = vpop.f32.mrf.mxu0
        %v797 = vadd.f32 %v724, %v796
        %v798 = vpop.f32.mrf.mxu0
        %v799 = vadd.f32 %v726, %v798
        %800 = vmatprep.mubr.bf16.mxu0 0
        %801 = vmatmul.mubr.bf16.gmra.mxu0 %v287
        %v802 = vpop.f32.mrf.mxu0
        %v803 = vadd.f32 %v730, %v802
        %v804 = vpop.f32.mrf.mxu0
        %v805 = vadd.f32 %v732, %v804
        %v806 = vpop.f32.mrf.mxu0
        %v807 = vadd.f32 %v734, %v806
        %v808 = vpop.f32.mrf.mxu0
        %v809 = vadd.f32 %v736, %v808
        %810 = vmatprep.mubr.bf16.mxu0 0
        %811 = vmatmul.mubr.bf16.gmra.mxu0 %v290
        %v812 = vpop.f32.mrf.mxu0
        %v813 = vadd.f32 %v740, %v812
        %v814 = vpop.f32.mrf.mxu0
        %v815 = vadd.f32 %v742, %v814
        %v816 = vpop.f32.mrf.mxu0
        %v817 = vadd.f32 %v744, %v816
        %v818 = vpop.f32.mrf.mxu0
        %v819 = vadd.f32 %v746, %v818
        %820 = vdwg.mxu0
        %821 = vmatprep.subr.bf16.mxu0 0
        %822 = vmatpush1.bf16.msra.mxu0 %v554
        %823 = vmatprep.subr.bf16.mxu0 0
        %824 = vmatpush1.bf16.msra.mxu0 %v551
        %825 = vmatprep.subr.bf16.mxu0 0
        %826 = vmatpush1.bf16.msra.mxu0 %v548
        %827 = vmatprep.subr.bf16.mxu0 0
        %828 = vmatpush1.bf16.msra.mxu0 %v545
        %829 = vmatprep.subr.bf16.mxu0 0
        %830 = vmatpush1.bf16.msra.mxu0 %v542
        %831 = vmatprep.subr.bf16.mxu0 0
        %832 = vmatpush1.bf16.msra.mxu0 %v539
        %833 = vmatprep.subr.bf16.mxu0 0
        %834 = vmatpush1.bf16.msra.mxu0 %v536
        %835 = vmatprep.subr.bf16.mxu0 0
        %836 = vmatpush1.bf16.msra.mxu0 %v533
        %837 = vmatprep.subr.bf16.mxu0 0
        %838 = vmatpush2.bf16.msra.mxu0 %v578
        %839 = vmatprep.subr.bf16.mxu0 0
        %840 = vmatpush2.bf16.msra.mxu0 %v575
        %841 = vmatprep.subr.bf16.mxu0 0
        %842 = vmatpush2.bf16.msra.mxu0 %v572
        %843 = vmatprep.subr.bf16.mxu0 0
        %844 = vmatpush2.bf16.msra.mxu0 %v569
        %845 = vmatprep.subr.bf16.mxu0 0
        %846 = vmatpush2.bf16.msra.mxu0 %v566
        %847 = vmatprep.subr.bf16.mxu0 0
        %848 = vmatpush2.bf16.msra.mxu0 %v563
        %849 = vmatprep.subr.bf16.mxu0 0
        %850 = vmatpush2.bf16.msra.mxu0 %v560
        %851 = vmatprep.subr.bf16.mxu0 0
        %852 = vmatpush2.bf16.msra.mxu0 %v557
        %853 = vmatprep.mubr.bf16.mxu0 %v280
        %854 = vmatmul.mubr.bf16.gmra.mxu0 %v279
        %v855 = vpop.f32.mrf.mxu0
        %v856 = vadd.f32 0.0, %v855
        %v857 = vpop.f32.mrf.mxu0
        %v858 = vpop.f32.mrf.mxu0
        %v859 = vadd.f32 0.0, %v858
        %v860 = vpop.f32.mrf.mxu0
        %861 = vmatprep.mubr.bf16.mxu0 %v283
        %862 = vmatmul.mubr.bf16.gmra.mxu0 %v282
        %v863 = vpop.f32.mrf.mxu0
        %v864 = vadd.f32 0.0, %v863
        %v865 = vpop.f32.mrf.mxu0
        %v866 = vpop.f32.mrf.mxu0
        %v867 = vadd.f32 0.0, %v866
        %v868 = vpop.f32.mrf.mxu0
        %869 = vmatprep.mubr.bf16.mxu0 %v286
        %870 = vmatmul.mubr.bf16.gmra.mxu0 %v285
        %v871 = vpop.f32.mrf.mxu0
        %v872 = vadd.f32 0.0, %v871
        %v873 = vpop.f32.mrf.mxu0
        %v874 = vpop.f32.mrf.mxu0
        %v875 = vadd.f32 0.0, %v874
        %v876 = vpop.f32.mrf.mxu0
        %877 = vmatprep.mubr.bf16.mxu0 %v289
        %878 = vmatmul.mubr.bf16.gmra.mxu0 %v288
        %v879 = vpop.f32.mrf.mxu0
        %v880 = vadd.f32 0.0, %v879
        %v881 = vpop.f32.mrf.mxu0
        %v882 = vpop.f32.mrf.mxu0
        %v883 = vadd.f32 0.0, %v882
        %v884 = vpop.f32.mrf.mxu0
        %885 = vdwg.mxu0
        %886 = vmatprep.subr.bf16.mxu0 0
        %887 = vmatpush1.bf16.msra.mxu0 %v602
        %888 = vmatprep.subr.bf16.mxu0 0
        %889 = vmatpush1.bf16.msra.mxu0 %v599
        %890 = vmatprep.subr.bf16.mxu0 0
        %891 = vmatpush1.bf16.msra.mxu0 %v596
        %892 = vmatprep.subr.bf16.mxu0 0
        %893 = vmatpush1.bf16.msra.mxu0 %v593
        %894 = vmatprep.subr.bf16.mxu0 0
        %895 = vmatpush1.bf16.msra.mxu0 %v590
        %896 = vmatprep.subr.bf16.mxu0 0
        %897 = vmatpush1.bf16.msra.mxu0 %v587
        %898 = vmatprep.subr.bf16.mxu0 0
        %899 = vmatpush1.bf16.msra.mxu0 %v584
        %900 = vmatprep.subr.bf16.mxu0 0
        %901 = vmatpush1.bf16.msra.mxu0 %v581
        %902 = vmatprep.subr.bf16.mxu0 0
        %903 = vmatpush2.bf16.msra.mxu0 0
        %904 = vmatprep.subr.bf16.mxu0 0
        %905 = vmatpush2.bf16.msra.mxu0 0
        %906 = vmatprep.subr.bf16.mxu0 0
        %907 = vmatpush2.bf16.msra.mxu0 0
        %908 = vmatprep.subr.bf16.mxu0 0
        %909 = vmatpush2.bf16.msra.mxu0 0
        %910 = vmatprep.subr.bf16.mxu0 0
        %911 = vmatpush2.bf16.msra.mxu0 0
        %912 = vmatprep.subr.bf16.mxu0 0
        %913 = vmatpush2.bf16.msra.mxu0 0
        %914 = vmatprep.subr.bf16.mxu0 0
        %915 = vmatpush2.bf16.msra.mxu0 0
        %916 = vmatprep.subr.bf16.mxu0 0
        %917 = vmatpush2.bf16.msra.mxu0 0
        %918 = vmatprep.mubr.bf16.mxu0 0
        %919 = vmatmul.mubr.bf16.gmra.mxu0 %v281
        %v920 = vpop.f32.mrf.mxu0
        %v921 = vadd.f32 %v856, %v920
        %v922 = vpop.f32.mrf.mxu0
        %v923 = vpop.f32.mrf.mxu0
        %v924 = vadd.f32 %v859, %v923
        %v925 = vpop.f32.mrf.mxu0
        %926 = vmatprep.mubr.bf16.mxu0 0
        %927 = vmatmul.mubr.bf16.gmra.mxu0 %v284
        %v928 = vpop.f32.mrf.mxu0
        %v929 = vadd.f32 %v864, %v928
        %v930 = vpop.f32.mrf.mxu0
        %v931 = vpop.f32.mrf.mxu0
        %v932 = vadd.f32 %v867, %v931
        %v933 = vpop.f32.mrf.mxu0
        %934 = vmatprep.mubr.bf16.mxu0 0
        %935 = vmatmul.mubr.bf16.gmra.mxu0 %v287
        %v936 = vpop.f32.mrf.mxu0
        %v937 = vadd.f32 %v872, %v936
        %v938 = vpop.f32.mrf.mxu0
        %v939 = vpop.f32.mrf.mxu0
        %v940 = vadd.f32 %v875, %v939
        %v941 = vpop.f32.mrf.mxu0
        %942 = vmatprep.mubr.bf16.mxu0 0
        %943 = vmatmul.mubr.bf16.gmra.mxu0 %v290
        %v944 = vpop.f32.mrf.mxu0
        %v945 = vadd.f32 %v880, %v944
        %v946 = vpop.f32.mrf.mxu0
        %v947 = vpop.f32.mrf.mxu0
        %v948 = vadd.f32 %v883, %v947
        %v949 = vpop.f32.mrf.mxu0
        %950 = vdwg.mxu0
        %v951 = vmul.f32 %v783, 0.003921569
        %v952 = vmul.f32 %v785, 0.003921569
        %v953 = vmul.f32 %v921, 0.003921569
        %v954 = vmul.f32 %v787, 0.003921569
        %v955 = vmul.f32 %v789, 0.003921569
        %v956 = vmul.f32 %v924, 0.003921569
        %v957 = vmul.f32 %v793, 0.003921569
        %v958 = vmul.f32 %v795, 0.003921569
        %v959 = vmul.f32 %v929, 0.003921569
        %v960 = vmul.f32 %v797, 0.003921569
        %v961 = vmul.f32 %v799, 0.003921569
        %v962 = vmul.f32 %v932, 0.003921569
        %v963 = vmul.f32 %v803, 0.003921569
        %v964 = vmul.f32 %v805, 0.003921569
        %v965 = vmul.f32 %v937, 0.003921569
        %v966 = vmul.f32 %v807, 0.003921569
        %v967 = vmul.f32 %v809, 0.003921569
        %v968 = vmul.f32 %v940, 0.003921569
        %v969 = vmul.f32 %v813, 0.003921569
        %v970 = vmul.f32 %v815, 0.003921569
        %v971 = vmul.f32 %v945, 0.003921569
        %v972 = vmul.f32 %v817, 0.003921569
        %v973 = vmul.f32 %v819, 0.003921569
        %v974 = vmul.f32 %v948, 0.003921569
        %975 = vst [vmem:[%s163] sm:$0xff] %v951
        %976 = vst [vmem:[%s163 + $0x8] sm:$0xff] %v954
        %977 = vst [vmem:[%s163 + $0x10] sm:$0xff] %v957
        %978 = vst [vmem:[%s163 + $0x18] sm:$0xff] %v960
        %979 = vst [vmem:[%s163 + $0x20] sm:$0xff] %v963
        %980 = vst [vmem:[%s163 + $0x28] sm:$0xff] %v966
        %981 = vst [vmem:[%s163 + $0x30] sm:$0xff] %v969
        %982 = vst [vmem:[%s163 + $0x38] sm:$0xff] %v972
        %s983 = scalar_lea.vmem %s163, 64 [#allocation2]
        %984 = vst [vmem:[%s983] sm:$0xff] %v952
        %985 = vst [vmem:[%s983 + $0x8] sm:$0xff] %v955
        %986 = vst [vmem:[%s983 + $0x10] sm:$0xff] %v958
        %987 = vst [vmem:[%s983 + $0x18] sm:$0xff] %v961
        %988 = vst [vmem:[%s983 + $0x20] sm:$0xff] %v964
        %989 = vst [vmem:[%s983 + $0x28] sm:$0xff] %v967
        %990 = vst [vmem:[%s983 + $0x30] sm:$0xff] %v970
        %991 = vst [vmem:[%s983 + $0x38] sm:$0xff] %v973
        %s992 = scalar_lea.vmem %s163, 128 [#allocation2]
        %993 = vst [vmem:[%s992] sm:$0xff] %v953
        %994 = vst [vmem:[%s992 + $0x8] sm:$0xff] %v956
        %995 = vst [vmem:[%s992 + $0x10] sm:$0xff] %v959
        %996 = vst [vmem:[%s992 + $0x18] sm:$0xff] %v962
        %997 = vst [vmem:[%s992 + $0x20] sm:$0xff] %v965
        %998 = vst [vmem:[%s992 + $0x28] sm:$0xff] %v968
        %999 = vst [vmem:[%s992 + $0x30] sm:$0xff] %v971
        %1000 = vst [vmem:[%s992 + $0x38] sm:$0xff] %v974
        %s1001 = sand.u32 %s87, 1
        %s1002 = scalar_lea.sflag [#allocation3], %s1001
        %s1003 = sand.u32 %s87, 1
        %s1004 = smul.addr %s1003, 192
        %s1005 = scalar_lea.vmem [#allocation2], %s1004
        // Predicated region
        $region29: #{model_with_processing_forward.1} parent=27 // pred_check
          %p1006 = pneg %p97
        $region30: #{model_with_processing_forward.1} parent=27 // pred_check_branch
          %1008 = sbr.rel (%p1006) target = $region32
        $region31: #{model_with_processing_forward.1} parent=27 // pred_region
          #allocation5 [shape = 'u32[6]{0}', space=smem, size = 0x18, scoped, tag = 'DMA stride descriptor']
          %s1009 = smul.u32 8, %s21
          %s1011 = ssub.s32 3072, 3072
          %1012 = vsyncadd %s1002, %s1011
          %s1013 = smul.addr %s20, 48
          %s1014 = sadd.s32 %s1009, %s1013
          %s1015 = smul.addr %s1014, 128
          %s1016 = scalar_lea.hbm %s2, %s1015
          %s1018 = sshll.u32 1, 14
          %s1019 = sxor.u32 4294967295, %s1018
          %s1022 = sshll.u32 7, 18
          %s1023 = sxor.u32 4294967295, %s1022
          %s1024 = sand.u32 0, %s1023
          %s1026 = sor.u32 %s1024, 0
          %s1027 = sshll.u32 %s1005, 4
          %s1028 = int_to_ptr.vmem [resolvable:$true] %s1027
          %1034 = sst [smem:[#allocation5]] 1024
          %s1035 = scalar_lea.smem [#allocation5], 1
          %1036 = sst [smem:[%s1035]] 2048
          %s1037 = scalar_lea.smem [#allocation5], 2
          %1038 = sst [smem:[%s1037]] 8
          %s1039 = scalar_lea.smem [#allocation5], 3
          %1040 = sst [smem:[%s1039]] 128
          %s1041 = scalar_lea.smem [#allocation5], 4
          %1042 = sst [smem:[%s1041]] 128
          %s1043 = scalar_lea.smem [#allocation5], 5
          %1044 = sst [smem:[%s1043]] 8
          %1046 = dma.general %s1028, 3072, %s1016, %s1002, 131072, [#allocation5], %s1026, 0
        $region32: #{model_with_processing_forward.1} parent=27 // pred_fallthru
          _
      $region28: #{model_with_processing_forward.1} parent=5 // pred_fallthru
        _
      %p1047 = scmp.le.s32.totalorder 2, %s11
      // Predicated region
      $region33: #{model_with_processing_forward.1} parent=5 // pred_check
        %p1048 = pneg %p1047
      $region34: #{model_with_processing_forward.1} parent=5 // pred_check_branch
        %1050 = sbr.rel (%p1048) target = $region36
      $region35: #{model_with_processing_forward.1} parent=5 // pred_region
        %s1051 = ssub.s32 %s11, 2
        // Predicated region
        $region37: #{model_with_processing_forward.1} parent=35 // pred_check
          %p1052 = pneg %p103
        $region38: #{model_with_processing_forward.1} parent=35 // pred_check_branch
          %1054 = sbr.rel (%p1052) target = $region40
        $region39: #{model_with_processing_forward.1} parent=35 // pred_region
          %s1055 = sand.u32 %s88, 1
          %s1056 = scalar_lea.sflag [#allocation3], %s1055
          %s1057 = sand.u32 %s88, 1
          %s1058 = smul.addr %s1057, 192
          %s1059 = scalar_lea.vmem [#allocation2], %s1058
          %1060 = dma.done %s1056, 3072
        $region40: #{model_with_processing_forward.1} parent=35 // pred_fallthru
          _
      $region36: #{model_with_processing_forward.1} parent=5 // pred_fallthru
        _
    $region6: #{model_with_processing_forward.1} parent=1 // loop_footer
      %s15 = sadd.s32 1, %s11
    $region7: #{model_with_processing_forward.1} parent=1 // loop_footer_branch
      %10 = sbr.rel target = $region3
    $region8: #{model_with_processing_forward.1} parent=1 // loop_exit
      _
    %1061 = vsyncpa [#allocation3], 1
    %s1062 = scalar_lea.sflag [#allocation3], 1
    %1063 = vsyncpa %s1062, 1

</llo_original>
